<compile_context>
chip_gen: v7x
topology: tpu7x:2x2x1
jax: 0.10.0
libtpu: 0.0.40
codegen_flags: <defaults>
</compile_context>

<pallas_src>
import functools

import jax
import jax.numpy as jnp
from jax.experimental import pallas as pl
from jax.experimental.pallas import tpu as pltpu


# ----------------------------------------------------------------------------
# Pallas kernel: one batch tile of the whole fused MLP
# ----------------------------------------------------------------------------
def _mlp_kernel(pk_ref, w1_ref, w2_ref, b2_ref, wh_ref, bh_ref,
                dist_ref, cnt_ref, *, n_air, n_day):
    tb = pk_ref.shape[0]
    k1 = w1_ref.shape[0]                       # padded fused-feature width
    base = n_air + n_day                       # first continuous-feature lane
    bias_lane = base + 4                       # "ones" lane that folds b1

    pk = pk_ref[...]                           # (TB, 8) int32 packed inputs
    air = pk[:, 0:1]                           # (TB, 1) int32
    day = pk[:, 1:2]                           # (TB, 1) int32
    cont = pltpu.bitcast(pk[:, 2:6], jnp.float32)   # (TB, 4) f32

    # Fused layer-1 feature matrix: [one_hot(air) | one_hot(day) | cont | 1 | 0-pad]
    # Built with one iota + compares/selects; invalid (out-of-range) indices are
    # undefined behavior (PyTorch nn.Embedding would raise).
    col = jax.lax.broadcasted_iota(jnp.int32, (tb, k1), 1)
    feat = ((col == air) | (col == day + n_air) | (col == bias_lane)
            ).astype(jnp.float32)
    for j in range(4):                         # place the 4 continuous features
        feat = feat + jnp.where(col == base + j, cont[:, j:j + 1], 0.0)

    mx = w1_ref.dtype                          # bf16 (fast path) or f32

    # Layer 1: embedding gather + Linear + folded BN + bias in ONE MXU launch.
    h1 = jnp.dot(feat.astype(mx), w1_ref[...], preferred_element_type=jnp.float32)
    h1 = jnp.maximum(h1, 0.0)                  # (TB, 64)

    # Layer 2 (BN folded into w2/b2).
    h2 = jnp.dot(h1.astype(mx), w2_ref[...], preferred_element_type=jnp.float32)
    h2 = jnp.maximum(h2 + b2_ref[...], 0.0)    # (TB, 32)

    # Fused heads: columns 0:31 = distribution logits, column 31 = count.
    head = jnp.dot(h2.astype(mx), wh_ref[...], preferred_element_type=jnp.float32)
    head = head + bh_ref[...]                  # (TB, 32)

    logits = head[:, :31]
    m = jnp.max(logits, axis=-1, keepdims=True)
    e = jnp.exp(logits - m)
    s = jnp.sum(e, axis=-1, keepdims=True)
    inv = pl.reciprocal(s, approx=True)        # EUP
    inv = inv * (2.0 - s * inv)                # one Newton step -> full f32 accuracy
    dist_ref[...] = (e * inv).astype(dist_ref.dtype)

    cnt_ref[...] = jnp.maximum(head[:, 31:32], 0.0).astype(cnt_ref.dtype)


# ----------------------------------------------------------------------------
# Wrapper: parameter folding + input packing + batch tiling + pallas_call
# ----------------------------------------------------------------------------
def _round_up(x, m):
    return ((x + m - 1) // m) * m


@functools.partial(jax.jit, static_argnames=("tile_b", "use_bf16"))
def flight_baggage_forward(aircraft_type, day_of_week, continuous_feats, params,
                           tile_b=2048, use_bf16=True):
    B = continuous_feats.shape[0]
    eps = 1e-5

    # Fold eval-mode BatchNorm into the preceding Linear.
    def fold_bn(w, b, gamma, beta, mean, var):
        scale = gamma / jnp.sqrt(var + eps)
        return w * scale[None, :], b * scale + (beta - mean * scale)

    w1f, b1f = fold_bn(params["w1"], params["b1"], params["bn1_gamma"],
                       params["bn1_beta"], params["bn1_mean"], params["bn1_var"])
    w2f, b2f = fold_bn(params["w2"], params["b2"], params["bn2_gamma"],
                       params["bn2_beta"], params["bn2_mean"], params["bn2_var"])

    e_air = params["emb_aircraft"].astype(jnp.float32)       # (n_air, 4)
    e_day = params["emb_day"].astype(jnp.float32)            # (n_day, 3)
    n_air, d_air = e_air.shape
    n_day, d_day = e_day.shape

    # Fold the embedding tables and b1 through layer 1 into ONE fused weight:
    #   feat = [one_hot(air) | one_hot(day) | cont | 1]  (K1 lanes, zero-padded)
    w_air = e_air @ w1f[:d_air]                               # (n_air, 64)
    w_day = e_day @ w1f[d_air:d_air + d_day]                  # (n_day, 64)
    w_cont = w1f[d_air + d_day:]                              # (4, 64)
    k1 = n_air + n_day + 4 + 1
    k1p = _round_up(k1, 8)
    w1_fused = jnp.concatenate(
        [w_air, w_day, w_cont, b1f[None, :],
         jnp.zeros((k1p - k1, w1f.shape[1]), jnp.float32)], axis=0)   # (k1p, 64)

    # Fuse the two heads into one lane-dense (32, 32) weight.
    w_head = jnp.concatenate([params["w3"], params["w4"]], axis=1)    # (32, 32)
    b_head = jnp.concatenate([params["b3"], params["b4"]], axis=0)    # (32,)

    mx = jnp.bfloat16 if use_bf16 else jnp.float32            # MXU operand dtype
    w1m = w1_fused.astype(mx)
    w2m = w2f.astype(mx)
    whm = w_head.astype(mx)

    # Batch tiling: TB multiple of 8, <= tile_b, and capped so large B gets
    # >= 2 grid steps (lets v7x shard tiles across both TensorCores).
    TB = min(int(tile_b), max(8, _round_up((B + 1) // 2, 8)))
    B_pad = _round_up(B, TB)
    grid = B_pad // TB
    pad = B_pad - B

    # Pack [air, day, bitcast(cont), 0, 0] into one (B, 8) int32 stream:
    # one 32 B/row DMA instead of three tiny-granule streams.
    packed = jnp.concatenate(
        [aircraft_type.astype(jnp.int32)[:, None],
         day_of_week.astype(jnp.int32)[:, None],
         jax.lax.bitcast_convert_type(continuous_feats.astype(jnp.float32),
                                      jnp.int32),
         jnp.zeros((B, 2), jnp.int32)], axis=1)
    if pad:  # only pad when B % TB != 0
        packed = jnp.pad(packed, ((0, pad), (0, 0)))

    def const_spec(shape):
        return pl.BlockSpec(shape, lambda i: (0, 0))   # VMEM-resident across the grid

    kernel = functools.partial(_mlp_kernel, n_air=n_air, n_day=n_day)

    dist, cnt = pl.pallas_call(
        kernel,
        out_shape=(jax.ShapeDtypeStruct((B_pad, 31), jnp.float32),
                   jax.ShapeDtypeStruct((B_pad, 1), jnp.float32)),
        grid=(grid,),
        in_specs=[
            pl.BlockSpec((TB, 8), lambda i: (i, 0)),   # packed indices + cont feats
            const_spec(w1m.shape),                     # fused layer-1 weight (+b1)
            const_spec(w2m.shape),                     # layer-2 weight (BN folded)
            const_spec((1, b2f.shape[0])),             # layer-2 bias
            const_spec(whm.shape),                     # fused head weight
            const_spec((1, b_head.shape[0])),          # fused head bias
        ],
        out_specs=[pl.BlockSpec((TB, 31), lambda i: (i, 0)),
                   pl.BlockSpec((TB, 1), lambda i: (i, 0))],
        compiler_params=pltpu.CompilerParams(
            dimension_semantics=("parallel",),         # shard batch tiles across TCs
            vmem_limit_bytes=48 * 1024 * 1024),
    )(packed, w1m, w2m, b2f.reshape(1, -1), whm, b_head.reshape(1, -1))

    if pad:  # only slice when padding was added
        dist, cnt = dist[:B], cnt[:B]
    return dist, cnt


# ----------------------------------------------------------------------------
# Pure-JAX reference (mirrors the PyTorch eval-mode forward)
# ----------------------------------------------------------------------------
def reference_forward(aircraft_type, day_of_week, continuous_feats, params, eps=1e-5):
    emb_air = params["emb_aircraft"][aircraft_type]
    emb_day = params["emb_day"][day_of_week]
    x = jnp.concatenate([emb_air, emb_day, continuous_feats], axis=1)

    def layer(x, w, b, g, be, mu, var):
        x = x @ w + b
        x = (x - mu) / jnp.sqrt(var + eps) * g + be
        return jax.nn.relu(x)

    x = layer(x, params["w1"], params["b1"], params["bn1_gamma"], params["bn1_beta"],
              params["bn1_mean"], params["bn1_var"])
    x = layer(x, params["w2"], params["b2"], params["bn2_gamma"], params["bn2_beta"],
              params["bn2_mean"], params["bn2_var"])
    dist = jax.nn.softmax(x @ params["w3"] + params["b3"], axis=1)
    cnt = jax.nn.relu(x @ params["w4"] + params["b4"])
    return dist, cnt


# ----------------------------------------------------------------------------
# Deterministic parameter init (shapes match the PyTorch module __init__)
# ----------------------------------------------------------------------------
def init_params(key, num_aircraft_types=10, num_dayofweek=7,
                embed_dim_aircraft=4, embed_dim_day=3, hidden_sizes=(64, 32)):
    input_dim = embed_dim_aircraft + embed_dim_day + 4
    h1, h2 = hidden_sizes
    keys = jax.random.split(key, 16)

    def linear(kw, kb, fan_in, fan_out):
        bound = 1.0 / jnp.sqrt(fan_in)
        w = jax.random.uniform(kw, (fan_in, fan_out), jnp.float32, -bound, bound)
        b = jax.random.uniform(kb, (fan_out,), jnp.float32, -bound, bound)
        return w, b

    w1, b1 = linear(keys[0], keys[1], input_dim, h1)
    w2, b2 = linear(keys[2], keys[3], h1, h2)
    w3, b3 = linear(keys[4], keys[5], h2, 31)
    w4, b4 = linear(keys[6], keys[7], h2, 1)

    return dict(
        emb_aircraft=jax.random.normal(keys[8], (num_aircraft_types, embed_dim_aircraft),
                                       jnp.float32),
        emb_day=jax.random.normal(keys[9], (num_dayofweek, embed_dim_day), jnp.float32),
        w1=w1, b1=b1, w2=w2, b2=b2, w3=w3, b3=b3, w4=w4, b4=b4,
        bn1_gamma=1.0 + 0.05 * jax.random.normal(keys[10], (h1,), jnp.float32),
        bn1_beta=0.05 * jax.random.normal(keys[11], (h1,), jnp.float32),
        bn1_mean=0.1 * jax.random.normal(keys[12], (h1,), jnp.float32),
        bn1_var=jnp.abs(1.0 + 0.1 * jax.random.normal(keys[13], (h1,), jnp.float32)),
        bn2_gamma=1.0 + 0.05 * jax.random.normal(keys[14], (h2,), jnp.float32),
        bn2_beta=0.05 * jax.random.normal(keys[15], (h2,), jnp.float32),
        bn2_mean=jnp.zeros((h2,), jnp.float32),
        bn2_var=jnp.ones((h2,), jnp.float32),
    )


if __name__ == "__main__":
    key = jax.random.PRNGKey(0)
    kp, ka, kd, kc = jax.random.split(key, 4)

    num_aircraft_types = 10
    batch = 8

    params = init_params(kp, num_aircraft_types=num_aircraft_types)
    aircraft_type = jax.random.randint(ka, (batch,), 0, num_aircraft_types, jnp.int32)
    day_of_week = jax.random.randint(kd, (batch,), 0, 7, jnp.int32)
    continuous_feats = jax.random.normal(kc, (batch, 4), jnp.float32)

    ref_dist, ref_cnt = reference_forward(aircraft_type, day_of_week,
                                          continuous_feats, params)

    # f32-MXU path (closest to PyTorch numerics)
    d32, c32 = flight_baggage_forward(aircraft_type, day_of_week, continuous_feats,
                                      params, use_bf16=False)
    # default bf16-MXU fast path (f32 accumulation)
    d16, c16 = flight_baggage_forward(aircraft_type, day_of_week, continuous_feats,
                                      params)
    jax.block_until_ready((d32, c32, d16, c16))

    assert d32.shape == (batch, 31) and c32.shape == (batch, 1)
    assert d16.shape == (batch, 31) and c16.shape == (batch, 1)
    assert jnp.allclose(jnp.sum(d32, axis=1), 1.0, atol=1e-4)
    assert jnp.allclose(jnp.sum(d16, axis=1), 1.0, atol=1e-3)
    assert jnp.all(c32 >= 0.0) and jnp.all(c16 >= 0.0)
    assert jnp.allclose(d32, ref_dist, atol=2e-3)
    assert jnp.allclose(c32, ref_cnt, atol=2e-3)
    assert jnp.allclose(d16, ref_dist, atol=5e-2)
    assert jnp.allclose(c16, ref_cnt, atol=5e-2)

    print("KERNEL_OK")
</pallas_src>

<mosaic_0001>
module attributes {stable_mosaic.version = 11 : i64} {
  func.func @_mlp_kernel(%arg0: i32, %arg1: memref<8x8xi32, #tpu.memory_space<vmem>>, %arg2: memref<24x64xf32, #tpu.memory_space<vmem>>, %arg3: memref<64x32xf32, #tpu.memory_space<vmem>>, %arg4: memref<1x32xf32, #tpu.memory_space<vmem>>, %arg5: memref<32x32xf32, #tpu.memory_space<vmem>>, %arg6: memref<1x32xf32, #tpu.memory_space<vmem>>, %arg7: memref<8x31xf32, #tpu.memory_space<vmem>>, %arg8: memref<8x1xf32, #tpu.memory_space<vmem>>) attributes {dimension_semantics = [#tpu.dimension_semantics<parallel>], iteration_bounds = array<i64: 1>, scalar_prefetch = 0 : i64, scratch_operands = 0 : i64, tpu.core_type = #tpu.core_type<tc>, window_params = [{transform_indices = @transform_0, window_bounds = array<i64: 8, 8>}, {pipeline_mode = #tpu.pipeline_mode<synchronous>, transform_indices = @transform_1, window_bounds = array<i64: 24, 64>}, {pipeline_mode = #tpu.pipeline_mode<synchronous>, transform_indices = @transform_2, window_bounds = array<i64: 64, 32>}, {pipeline_mode = #tpu.pipeline_mode<synchronous>, transform_indices = @transform_3, window_bounds = array<i64: 1, 32>}, {pipeline_mode = #tpu.pipeline_mode<synchronous>, transform_indices = @transform_4, window_bounds = array<i64: 32, 32>}, {pipeline_mode = #tpu.pipeline_mode<synchronous>, transform_indices = @transform_5, window_bounds = array<i64: 1, 32>}, {transform_indices = @transform_6, window_bounds = array<i64: 8, 31>}, {transform_indices = @transform_7, window_bounds = array<i64: 8, 1>}]} {
    %c0 = arith.constant 0 : index
    %c0_0 = arith.constant 0 : index
    %0 = vector.load %arg1[%c0, %c0_0] : memref<8x8xi32, #tpu.memory_space<vmem>>, vector<8x8xi32>
    %1 = vector.extract_strided_slice %0 {offsets = [0, 0], sizes = [8, 1], strides = [1, 1]} : vector<8x8xi32> to vector<8x1xi32>
    %2 = vector.extract_strided_slice %0 {offsets = [0, 1], sizes = [8, 1], strides = [1, 1]} : vector<8x8xi32> to vector<8x1xi32>
    %3 = vector.extract_strided_slice %0 {offsets = [0, 2], sizes = [8, 4], strides = [1, 1]} : vector<8x8xi32> to vector<8x4xi32>
    %4 = tpu.bitcast %3 : vector<8x4xi32> -> vector<8x4xf32>
    %5 = tpu.iota {dimensions = array<i32: 1>} : vector<8x24xi32>
    %6 = vector.broadcast %1 : vector<8x1xi32> to vector<8x24xi32>
    %7 = arith.cmpi eq, %5, %6 : vector<8x24xi32>
    %c10_i32 = arith.constant 10 : i32
    %8 = vector.broadcast %c10_i32 : i32 to vector<8x1xi32>
    %9 = arith.addi %2, %8 : vector<8x1xi32>
    %10 = vector.broadcast %9 : vector<8x1xi32> to vector<8x24xi32>
    %11 = arith.cmpi eq, %5, %10 : vector<8x24xi32>
    %12 = arith.ori %7, %11 : vector<8x24xi1>
    %c21_i32 = arith.constant 21 : i32
    %13 = vector.broadcast %c21_i32 : i32 to vector<8x24xi32>
    %14 = arith.cmpi eq, %5, %13 : vector<8x24xi32>
    %15 = arith.ori %12, %14 : vector<8x24xi1>
    %16 = arith.extui %15 : vector<8x24xi1> to vector<8x24xi32>
    %17 = arith.sitofp %16 : vector<8x24xi32> to vector<8x24xf32>
    %c17_i32 = arith.constant 17 : i32
    %18 = vector.broadcast %c17_i32 : i32 to vector<8x24xi32>
    %19 = arith.cmpi eq, %5, %18 : vector<8x24xi32>
    %20 = vector.extract_strided_slice %4 {offsets = [0, 0], sizes = [8, 1], strides = [1, 1]} : vector<8x4xf32> to vector<8x1xf32>
    %cst = arith.constant 0.000000e+00 : f32
    %21 = vector.shape_cast %20 : vector<8x1xf32> to vector<8x1xf32>
    %22 = vector.broadcast %21 : vector<8x1xf32> to vector<8x24xf32>
    %23 = vector.broadcast %cst : f32 to vector<8x24xf32>
    %24 = arith.select %19, %22, %23 : vector<8x24xi1>, vector<8x24xf32>
    %25 = arith.addf %17, %24 : vector<8x24xf32>
    %c18_i32 = arith.constant 18 : i32
    %26 = vector.broadcast %c18_i32 : i32 to vector<8x24xi32>
    %27 = arith.cmpi eq, %5, %26 : vector<8x24xi32>
    %28 = vector.extract_strided_slice %4 {offsets = [0, 1], sizes = [8, 1], strides = [1, 1]} : vector<8x4xf32> to vector<8x1xf32>
    %cst_1 = arith.constant 0.000000e+00 : f32
    %29 = vector.shape_cast %28 : vector<8x1xf32> to vector<8x1xf32>
    %30 = vector.broadcast %29 : vector<8x1xf32> to vector<8x24xf32>
    %31 = vector.broadcast %cst_1 : f32 to vector<8x24xf32>
    %32 = arith.select %27, %30, %31 : vector<8x24xi1>, vector<8x24xf32>
    %33 = arith.addf %25, %32 : vector<8x24xf32>
    %c19_i32 = arith.constant 19 : i32
    %34 = vector.broadcast %c19_i32 : i32 to vector<8x24xi32>
    %35 = arith.cmpi eq, %5, %34 : vector<8x24xi32>
    %36 = vector.extract_strided_slice %4 {offsets = [0, 2], sizes = [8, 1], strides = [1, 1]} : vector<8x4xf32> to vector<8x1xf32>
    %cst_2 = arith.constant 0.000000e+00 : f32
    %37 = vector.shape_cast %36 : vector<8x1xf32> to vector<8x1xf32>
    %38 = vector.broadcast %37 : vector<8x1xf32> to vector<8x24xf32>
    %39 = vector.broadcast %cst_2 : f32 to vector<8x24xf32>
    %40 = arith.select %35, %38, %39 : vector<8x24xi1>, vector<8x24xf32>
    %41 = arith.addf %33, %40 : vector<8x24xf32>
    %c20_i32 = arith.constant 20 : i32
    %42 = vector.broadcast %c20_i32 : i32 to vector<8x24xi32>
    %43 = arith.cmpi eq, %5, %42 : vector<8x24xi32>
    %44 = vector.extract_strided_slice %4 {offsets = [0, 3], sizes = [8, 1], strides = [1, 1]} : vector<8x4xf32> to vector<8x1xf32>
    %cst_3 = arith.constant 0.000000e+00 : f32
    %45 = vector.shape_cast %44 : vector<8x1xf32> to vector<8x1xf32>
    %46 = vector.broadcast %45 : vector<8x1xf32> to vector<8x24xf32>
    %47 = vector.broadcast %cst_3 : f32 to vector<8x24xf32>
    %48 = arith.select %43, %46, %47 : vector<8x24xi1>, vector<8x24xf32>
    %49 = arith.addf %41, %48 : vector<8x24xf32>
    %c0_4 = arith.constant 0 : index
    %c0_5 = arith.constant 0 : index
    %50 = vector.load %arg2[%c0_4, %c0_5] : memref<24x64xf32, #tpu.memory_space<vmem>>, vector<24x64xf32>
    %cst_6 = arith.constant dense<0.000000e+00> : vector<8x64xf32>
    %51 = tpu.matmul %49, %50, %cst_6 {dimension_numbers = #tpu.dot_dimension_numbers<[1], [0], [0], [1], [0, 0, 1, 1], [], []>} : vector<8x24xf32>, vector<24x64xf32>, vector<8x64xf32> -> vector<8x64xf32>
    %cst_7 = arith.constant 0.000000e+00 : f32
    %52 = vector.broadcast %cst_7 : f32 to vector<8x64xf32>
    %53 = arith.maximumf %51, %52 : vector<8x64xf32>
    %c0_8 = arith.constant 0 : index
    %c0_9 = arith.constant 0 : index
    %54 = vector.load %arg3[%c0_8, %c0_9] : memref<64x32xf32, #tpu.memory_space<vmem>>, vector<64x32xf32>
    %cst_10 = arith.constant dense<0.000000e+00> : vector<8x32xf32>
    %55 = tpu.matmul %53, %54, %cst_10 {dimension_numbers = #tpu.dot_dimension_numbers<[1], [0], [0], [1], [0, 0, 1, 1], [], []>} : vector<8x64xf32>, vector<64x32xf32>, vector<8x32xf32> -> vector<8x32xf32>
    %c0_11 = arith.constant 0 : index
    %c0_12 = arith.constant 0 : index
    %56 = vector.load %arg4[%c0_11, %c0_12] : memref<1x32xf32, #tpu.memory_space<vmem>>, vector<1x32xf32>
    %57 = vector.broadcast %56 : vector<1x32xf32> to vector<8x32xf32>
    %58 = arith.addf %55, %57 : vector<8x32xf32>
    %cst_13 = arith.constant 0.000000e+00 : f32
    %59 = vector.broadcast %cst_13 : f32 to vector<8x32xf32>
    %60 = arith.maximumf %58, %59 : vector<8x32xf32>
    %c0_14 = arith.constant 0 : index
    %c0_15 = arith.constant 0 : index
    %61 = vector.load %arg5[%c0_14, %c0_15] : memref<32x32xf32, #tpu.memory_space<vmem>>, vector<32x32xf32>
    %cst_16 = arith.constant dense<0.000000e+00> : vector<8x32xf32>
    %62 = tpu.matmul %60, %61, %cst_16 {dimension_numbers = #tpu.dot_dimension_numbers<[1], [0], [0], [1], [0, 0, 1, 1], [], []>} : vector<8x32xf32>, vector<32x32xf32>, vector<8x32xf32> -> vector<8x32xf32>
    %c0_17 = arith.constant 0 : index
    %c0_18 = arith.constant 0 : index
    %63 = vector.load %arg6[%c0_17, %c0_18] : memref<1x32xf32, #tpu.memory_space<vmem>>, vector<1x32xf32>
    %64 = vector.broadcast %63 : vector<1x32xf32> to vector<8x32xf32>
    %65 = arith.addf %62, %64 : vector<8x32xf32>
    %66 = vector.extract_strided_slice %65 {offsets = [0, 0], sizes = [8, 31], strides = [1, 1]} : vector<8x32xf32> to vector<8x31xf32>
    %cst_19 = arith.constant dense<0xFF800000> : vector<8xf32>
    %67 = vector.multi_reduction <maximumf>, %66, %cst_19 [1] : vector<8x31xf32> to vector<8xf32>
    %68 = vector.shape_cast %67 : vector<8xf32> to vector<8x1xf32>
    %69 = vector.broadcast %68 : vector<8x1xf32> to vector<8x31xf32>
    %70 = arith.subf %66, %69 : vector<8x31xf32>
    %71 = math.exp %70 : vector<8x31xf32>
    %cst_20 = arith.constant dense<0.000000e+00> : vector<8xf32>
    %72 = vector.multi_reduction <add>, %71, %cst_20 [1] : vector<8x31xf32> to vector<8xf32>
    %73 = vector.shape_cast %72 : vector<8xf32> to vector<8x1xf32>
    %74 = tpu.reciprocal %73 {approx = true} : vector<8x1xf32> -> vector<8x1xf32>
    %75 = arith.mulf %73, %74 : vector<8x1xf32>
    %cst_21 = arith.constant 2.000000e+00 : f32
    %76 = vector.broadcast %cst_21 : f32 to vector<8x1xf32>
    %77 = arith.subf %76, %75 : vector<8x1xf32>
    %78 = arith.mulf %74, %77 : vector<8x1xf32>
    %79 = vector.broadcast %78 : vector<8x1xf32> to vector<8x31xf32>
    %80 = arith.mulf %71, %79 : vector<8x31xf32>
    %c0_22 = arith.constant 0 : index
    %c0_23 = arith.constant 0 : index
    %81 = vector.load %arg7[%c0_22, %c0_23] : memref<8x31xf32, #tpu.memory_space<vmem>>, vector<8x31xf32>
    tpu.vector_store %arg7[%c0_22, %c0_23], %80 {strides = array<i32>} : memref<8x31xf32, #tpu.memory_space<vmem>>, vector<8x31xf32>,
    %82 = vector.extract_strided_slice %65 {offsets = [0, 31], sizes = [8, 1], strides = [1, 1]} : vector<8x32xf32> to vector<8x1xf32>
    %cst_24 = arith.constant 0.000000e+00 : f32
    %83 = vector.broadcast %cst_24 : f32 to vector<8x1xf32>
    %84 = arith.maximumf %82, %83 : vector<8x1xf32>
    %c0_25 = arith.constant 0 : index
    %c0_26 = arith.constant 0 : index
    %85 = vector.load %arg8[%c0_25, %c0_26] : memref<8x1xf32, #tpu.memory_space<vmem>>, vector<8x1xf32>
    tpu.vector_store %arg8[%c0_25, %c0_26], %84 {strides = array<i32>} : memref<8x1xf32, #tpu.memory_space<vmem>>, vector<8x1xf32>,
    return
  }
  func.func @transform_0(%arg0: i32) -> (i32, i32) {
    %c0_i32 = arith.constant 0 : i32
    %c0_i32_0 = arith.constant 0 : i32
    return %arg0, %c0_i32 : i32, i32
  }
  func.func @transform_1(%arg0: i32) -> (i32, i32) {
    %c0_i32 = arith.constant 0 : i32
    %c0_i32_0 = arith.constant 0 : i32
    %c0_i32_1 = arith.constant 0 : i32
    return %c0_i32, %c0_i32_0 : i32, i32
  }
  func.func @transform_2(%arg0: i32) -> (i32, i32) {
    %c0_i32 = arith.constant 0 : i32
    %c0_i32_0 = arith.constant 0 : i32
    %c0_i32_1 = arith.constant 0 : i32
    return %c0_i32, %c0_i32_0 : i32, i32
  }
  func.func @transform_3(%arg0: i32) -> (i32, i32) {
    %c0_i32 = arith.constant 0 : i32
    %c0_i32_0 = arith.constant 0 : i32
    %c0_i32_1 = arith.constant 0 : i32
    return %c0_i32, %c0_i32_0 : i32, i32
  }
  func.func @transform_4(%arg0: i32) -> (i32, i32) {
    %c0_i32 = arith.constant 0 : i32
    %c0_i32_0 = arith.constant 0 : i32
    %c0_i32_1 = arith.constant 0 : i32
    return %c0_i32, %c0_i32_0 : i32, i32
  }
  func.func @transform_5(%arg0: i32) -> (i32, i32) {
    %c0_i32 = arith.constant 0 : i32
    %c0_i32_0 = arith.constant 0 : i32
    %c0_i32_1 = arith.constant 0 : i32
    return %c0_i32, %c0_i32_0 : i32, i32
  }
  func.func @transform_6(%arg0: i32) -> (i32, i32) {
    %c0_i32 = arith.constant 0 : i32
    %c0_i32_0 = arith.constant 0 : i32
    return %arg0, %c0_i32 : i32, i32
  }
  func.func @transform_7(%arg0: i32) -> (i32, i32) {
    %c0_i32 = arith.constant 0 : i32
    %c0_i32_0 = arith.constant 0 : i32
    return %arg0, %c0_i32 : i32, i32
  }
}

</mosaic_0001>

<llo_original>
// kernel: flight_baggage_forward.1
$region0: #{flight_baggage_forward.1}
  #allocation0 [shape = 'u32[]', space=smem, size = 0x4, offset = 0x4, fixed_abs, tag = 'smem constant byte address 0x4 - core index']
  #allocation1 [shape = 'u32[144,128]{1,0:T(1,128)}', space=vmem, size = 0x12000, scoped, tag = 'internal scratch']
  %s0 = inlined_call_operand.vmem [shape: s32[8,8], index: 0, kind: input, shape index: {}]
  %s1 = inlined_call_operand.vmem [shape: f32[24,64], index: 1, kind: input, shape index: {}]
  %s2 = inlined_call_operand.vmem [shape: f32[64,32], index: 2, kind: input, shape index: {}]
  %s3 = inlined_call_operand.vmem [shape: f32[1,32], index: 3, kind: input, shape index: {}]
  %s4 = inlined_call_operand.vmem [shape: f32[32,32], index: 4, kind: input, shape index: {}]
  %s5 = inlined_call_operand.vmem [shape: f32[1,32], index: 5, kind: input, shape index: {}]
  %s6 = inlined_call_operand.hbm [shape: f32[8,31], index: 6, kind: output, shape index: {0}]
  %s7 = inlined_call_operand.vmem [shape: f32[8,1], index: 7, kind: output, shape index: {1}]
  %8 = xla_tuple %s6, %s7
  %s9 = sld [smem:[#allocation0]]
  $region42: #{flight_baggage_forward.1} parent=0
    _
  %s11 = ssub.s32 1, %s9
  %s12 = scalar_select 0, %s11, %s9
  $region1: #{flight_baggage_forward.1} parent=0
    #allocation2 [shape = 'u8[4096]{0}', space=vmem, size = 0x1000, scoped, tag = 'output window, operand 0, single buffered']
    #allocation3 [shape = 's32[1]{0}', space=sflag, size = 0x4, scoped, tag = 'scoped memory for flight_baggage_forward.1']
    %13 = vsyncpa [#allocation3], 0
    // Predicated region
    $region2: #{flight_baggage_forward.1} parent=1 // pred_check
      _
    $region3: #{flight_baggage_forward.1} parent=1 // pred_check_branch
      %15 = sbr.rel (0) target = $region5
    $region4: #{flight_baggage_forward.1} parent=1 // pred_region
      _
    $region5: #{flight_baggage_forward.1} parent=1 // pred_fallthru
      _
    // Predicated region
    $region6: #{flight_baggage_forward.1} parent=1 // pred_check
      _
    $region7: #{flight_baggage_forward.1} parent=1 // pred_check_branch
      %17 = sbr.rel (0) target = $region9
    $region8: #{flight_baggage_forward.1} parent=1 // pred_region
      _
    $region9: #{flight_baggage_forward.1} parent=1 // pred_fallthru
      _
    // Predicated region
    $region10: #{flight_baggage_forward.1} parent=1 // pred_check
      _
    $region11: #{flight_baggage_forward.1} parent=1 // pred_check_branch
      %19 = sbr.rel (0) target = $region13
    $region12: #{flight_baggage_forward.1} parent=1 // pred_region
      _
    $region13: #{flight_baggage_forward.1} parent=1 // pred_fallthru
      _
    // Predicated region
    $region14: #{flight_baggage_forward.1} parent=1 // pred_check
      _
    $region15: #{flight_baggage_forward.1} parent=1 // pred_check_branch
      %21 = sbr.rel (0) target = $region17
    $region16: #{flight_baggage_forward.1} parent=1 // pred_region
      _
    $region17: #{flight_baggage_forward.1} parent=1 // pred_fallthru
      _
    // Predicated region
    $region18: #{flight_baggage_forward.1} parent=1 // pred_check
      _
    $region19: #{flight_baggage_forward.1} parent=1 // pred_check_branch
      %23 = sbr.rel (0) target = $region21
    $region20: #{flight_baggage_forward.1} parent=1 // pred_region
      _
    $region21: #{flight_baggage_forward.1} parent=1 // pred_fallthru
      _
    // Predicated region
    $region22: #{flight_baggage_forward.1} parent=1 // pred_check
      _
    $region23: #{flight_baggage_forward.1} parent=1 // pred_check_branch
      %25 = sbr.rel (0) target = $region25
    $region24: #{flight_baggage_forward.1} parent=1 // pred_region
      _
    $region25: #{flight_baggage_forward.1} parent=1 // pred_fallthru
      _
    %v26 = vld [vmem:[%s0] sm:$0xff]
    %v27 = vlaneseq
    %v28 = vand.u32 %v27, 127
    %29 = vset.pattern.permute.xlu0 0
    %30 = vperm.xlu0 %29, %v26
    %v31 = vpop.permute.xlu0 %30
    %vm32 = vcmp.eq.s32.totalorder %v28, %v31
    %v33 = vadd.s32 %v26, 10
    %34 = vset.pattern.permute.xlu0 1
    %35 = vperm.xlu0 %34, %v33
    %v36 = vpop.permute.xlu0 %35
    %vm37 = vcmp.eq.s32.totalorder %v28, %v36
    %vm38 = vmor %vm32, %vm37
    %vm39 = vcmp.eq.s32.totalorder %v28, 21
    %vm40 = vmor %vm38, %vm39
    %v41 = vsel %vm40, 1, 0
    %v42 = vcvt.s32.f32 %v41
    %vm43 = vcmp.eq.s32.totalorder %v28, 17
    %44 = vset.pattern.permute.xlu0 2
    %45 = vperm.xlu0 %44, %v26
    %v46 = vpop.permute.xlu0 %45
    %v48 = vsel %vm43, %v46, 0.0
    %v49 = vadd.f32 %v42, %v48
    %vm50 = vcmp.eq.s32.totalorder %v28, 18
    %51 = vset.pattern.permute.xlu0 3
    %52 = vperm.xlu0 %51, %v26
    %v53 = vpop.permute.xlu0 %52
    %v55 = vsel %vm50, %v53, 0.0
    %v56 = vadd.f32 %v49, %v55
    %vm57 = vcmp.eq.s32.totalorder %v28, 19
    %58 = vset.pattern.permute.xlu0 4
    %59 = vperm.xlu0 %58, %v26
    %v60 = vpop.permute.xlu0 %59
    %v62 = vsel %vm57, %v60, 0.0
    %v63 = vadd.f32 %v56, %v62
    %vm64 = vcmp.eq.s32.totalorder %v28, 20
    %65 = vset.pattern.permute.xlu0 5
    %66 = vperm.xlu0 %65, %v26
    %v67 = vpop.permute.xlu0 %66
    %v69 = vsel %vm64, %v67, 0.0
    %v70 = vadd.f32 %v63, %v69
    %v71 = vld [vmem:[%s1] sm:$0xff]
    %v72 = vld [vmem:[%s1 + $0x8] sm:$0xff]
    %v73 = vld [vmem:[%s1 + $0x10] sm:$0xff]
    %vm74 = vcmask 195584
    %v76 = vsel %vm74, %v70, 0
    %78 = vmatprep.subr.mxu0 0.0
    %79 = vmatpush1.msra.mxu0 %v71
    %80 = vmatprep.subr.mxu0 0.0
    %81 = vmatpush1.msra.mxu0 %v72
    %82 = vmatprep.subr.mxu0 0.0
    %83 = vmatpush1.msra.mxu0 %v73
    %84 = vmatprep.subr.mxu0 0.0
    %85 = vmatpush1.msra.mxu0 0.0
    %86 = vmatprep.subr.mxu0 0.0
    %87 = vmatpush1.msra.mxu0 0.0
    %88 = vmatprep.subr.mxu0 0.0
    %89 = vmatpush1.msra.mxu0 0.0
    %90 = vmatprep.subr.mxu0 0.0
    %91 = vmatpush1.msra.mxu0 0.0
    %92 = vmatprep.subr.mxu0 0.0
    %93 = vmatpush1.msra.mxu0 0.0
    %94 = vmatprep.subr.mxu0 0.0
    %95 = vmatpush1.msra.mxu0 0.0
    %96 = vmatprep.subr.mxu0 0.0
    %97 = vmatpush1.msra.mxu0 0.0
    %98 = vmatprep.subr.mxu0 0.0
    %99 = vmatpush1.msra.mxu0 0.0
    %100 = vmatprep.subr.mxu0 0.0
    %101 = vmatpush1.msra.mxu0 0.0
    %102 = vmatprep.subr.mxu0 0.0
    %103 = vmatpush1.msra.mxu0 0.0
    %104 = vmatprep.subr.mxu0 0.0
    %105 = vmatpush1.msra.mxu0 0.0
    %106 = vmatprep.subr.mxu0 0.0
    %107 = vmatpush1.msra.mxu0 0.0
    %108 = vmatprep.subr.mxu0 0.0
    %109 = vmatpush1.msra.mxu0 0.0
    %110 = vmatprep.subr.mxu0 0.0
    %111 = vmatpush1.msra.mxu0 0.0
    %112 = vmatprep.subr.mxu0 0.0
    %113 = vmatpush1.msra.mxu0 0.0
    %114 = vmatprep.subr.mxu0 0.0
    %115 = vmatpush1.msra.mxu0 0.0
    %116 = vmatprep.subr.mxu0 0.0
    %117 = vmatpush1.msra.mxu0 0.0
    %118 = vmatprep.subr.mxu0 0.0
    %119 = vmatpush1.msra.mxu0 0.0
    %120 = vmatprep.subr.mxu0 0.0
    %121 = vmatpush1.msra.mxu0 0.0
    %122 = vmatprep.subr.mxu0 0.0
    %123 = vmatpush1.msra.mxu0 0.0
    %124 = vmatprep.subr.mxu0 0.0
    %125 = vmatpush1.msra.mxu0 0.0
    %126 = vmatprep.subr.mxu0 0.0
    %127 = vmatpush1.msra.mxu0 0.0
    %128 = vmatprep.subr.mxu0 0.0
    %129 = vmatpush1.msra.mxu0 0.0
    %130 = vmatprep.subr.mxu0 0.0
    %131 = vmatpush1.msra.mxu0 0.0
    %132 = vmatprep.subr.mxu0 0.0
    %133 = vmatpush1.msra.mxu0 0.0
    %134 = vmatprep.subr.mxu0 0.0
    %135 = vmatpush1.msra.mxu0 0.0
    %136 = vmatprep.subr.mxu0 0.0
    %137 = vmatpush1.msra.mxu0 0.0
    %138 = vmatprep.subr.mxu0 0.0
    %139 = vmatpush1.msra.mxu0 0.0
    %140 = vmatprep.subr.mxu0 0.0
    %141 = vmatpush1.msra.mxu0 0.0
    %142 = vmatprep.mubr.f32.mxu0 0.0
    %143 = vmatmul.mubr.f32.gmra.mrb[0].mxu0 %v76
    %v144 = vpop.f32.mrb[0].mxu0
    %v145 = vadd.f32 0.0, %v144
    %v146 = vpop.f32.mrb[0].mxu0
    %147 = vdwg.mxu0
    %v148 = vmax.f32 %v145, 0.0
    %v149 = vld [vmem:[%s2] sm:$0xff]
    %v150 = vld [vmem:[%s2 + $0x8] sm:$0xff]
    %v151 = vld [vmem:[%s2 + $0x10] sm:$0xff]
    %v152 = vld [vmem:[%s2 + $0x18] sm:$0xff]
    %v153 = vld [vmem:[%s2 + $0x20] sm:$0xff]
    %v154 = vld [vmem:[%s2 + $0x28] sm:$0xff]
    %v155 = vld [vmem:[%s2 + $0x30] sm:$0xff]
    %v156 = vld [vmem:[%s2 + $0x38] sm:$0xff]
    %v157 = vld [vmem:[%s3] sm:$0x1]
    %v159 = vlaneseq
    %v160 = vshrl.u32 %v159, 7
    %v161 = vsub.s32 0, %v160
    %v162 = vrot.slane %v157, %v161
    %vm164 = vcmask 523264
    %v166 = vsel %vm164, %v148, 0
    %168 = vmatprep.subr.mxu0 0.0
    %169 = vmatpush1.msra.mxu0 %v149
    %170 = vmatprep.subr.mxu0 0.0
    %171 = vmatpush1.msra.mxu0 %v150
    %172 = vmatprep.subr.mxu0 0.0
    %173 = vmatpush1.msra.mxu0 %v151
    %174 = vmatprep.subr.mxu0 0.0
    %175 = vmatpush1.msra.mxu0 %v152
    %176 = vmatprep.subr.mxu0 0.0
    %177 = vmatpush1.msra.mxu0 %v153
    %178 = vmatprep.subr.mxu0 0.0
    %179 = vmatpush1.msra.mxu0 %v154
    %180 = vmatprep.subr.mxu0 0.0
    %181 = vmatpush1.msra.mxu0 %v155
    %182 = vmatprep.subr.mxu0 0.0
    %183 = vmatpush1.msra.mxu0 %v156
    %184 = vmatprep.subr.mxu0 0.0
    %185 = vmatpush1.msra.mxu0 0.0
    %186 = vmatprep.subr.mxu0 0.0
    %187 = vmatpush1.msra.mxu0 0.0
    %188 = vmatprep.subr.mxu0 0.0
    %189 = vmatpush1.msra.mxu0 0.0
    %190 = vmatprep.subr.mxu0 0.0
    %191 = vmatpush1.msra.mxu0 0.0
    %192 = vmatprep.subr.mxu0 0.0
    %193 = vmatpush1.msra.mxu0 0.0
    %194 = vmatprep.subr.mxu0 0.0
    %195 = vmatpush1.msra.mxu0 0.0
    %196 = vmatprep.subr.mxu0 0.0
    %197 = vmatpush1.msra.mxu0 0.0
    %198 = vmatprep.subr.mxu0 0.0
    %199 = vmatpush1.msra.mxu0 0.0
    %200 = vmatprep.subr.mxu0 0.0
    %201 = vmatpush1.msra.mxu0 0.0
    %202 = vmatprep.subr.mxu0 0.0
    %203 = vmatpush1.msra.mxu0 0.0
    %204 = vmatprep.subr.mxu0 0.0
    %205 = vmatpush1.msra.mxu0 0.0
    %206 = vmatprep.subr.mxu0 0.0
    %207 = vmatpush1.msra.mxu0 0.0
    %208 = vmatprep.subr.mxu0 0.0
    %209 = vmatpush1.msra.mxu0 0.0
    %210 = vmatprep.subr.mxu0 0.0
    %211 = vmatpush1.msra.mxu0 0.0
    %212 = vmatprep.subr.mxu0 0.0
    %213 = vmatpush1.msra.mxu0 0.0
    %214 = vmatprep.subr.mxu0 0.0
    %215 = vmatpush1.msra.mxu0 0.0
    %216 = vmatprep.subr.mxu0 0.0
    %217 = vmatpush1.msra.mxu0 0.0
    %218 = vmatprep.subr.mxu0 0.0
    %219 = vmatpush1.msra.mxu0 0.0
    %220 = vmatprep.subr.mxu0 0.0
    %221 = vmatpush1.msra.mxu0 0.0
    %222 = vmatprep.subr.mxu0 0.0
    %223 = vmatpush1.msra.mxu0 0.0
    %224 = vmatprep.subr.mxu0 0.0
    %225 = vmatpush1.msra.mxu0 0.0
    %226 = vmatprep.subr.mxu0 0.0
    %227 = vmatpush1.msra.mxu0 0.0
    %228 = vmatprep.subr.mxu0 0.0
    %229 = vmatpush1.msra.mxu0 0.0
    %230 = vmatprep.subr.mxu0 0.0
    %231 = vmatpush1.msra.mxu0 0.0
    %232 = vmatprep.mubr.f32.mxu0 0.0
    %233 = vmatmul.mubr.f32.gmra.mrb[0].mxu0 %v166
    %v234 = vpop.f32.mrb[0].mxu0
    %v235 = vadd.f32 %v162, %v234
    %v236 = vpop.f32.mrb[0].mxu0
    %237 = vdwg.mxu0
    %v238 = vmax.f32 %v235, 0.0
    %v239 = vld [vmem:[%s4] sm:$0xff]
    %v240 = vld [vmem:[%s4 + $0x8] sm:$0xff]
    %v241 = vld [vmem:[%s4 + $0x10] sm:$0xff]
    %v242 = vld [vmem:[%s4 + $0x18] sm:$0xff]
    %v243 = vld [vmem:[%s5] sm:$0x1]
    %v245 = vlaneseq
    %v246 = vshrl.u32 %v245, 7
    %v247 = vsub.s32 0, %v246
    %v248 = vrot.slane %v243, %v247
    %vm250 = vcmask 261120
    %v252 = vsel %vm250, %v238, 0
    %254 = vmatprep.subr.mxu0 0.0
    %255 = vmatpush1.msra.mxu0 %v239
    %256 = vmatprep.subr.mxu0 0.0
    %257 = vmatpush1.msra.mxu0 %v240
    %258 = vmatprep.subr.mxu0 0.0
    %259 = vmatpush1.msra.mxu0 %v241
    %260 = vmatprep.subr.mxu0 0.0
    %261 = vmatpush1.msra.mxu0 %v242
    %262 = vmatprep.subr.mxu0 0.0
    %263 = vmatpush1.msra.mxu0 0.0
    %264 = vmatprep.subr.mxu0 0.0
    %265 = vmatpush1.msra.mxu0 0.0
    %266 = vmatprep.subr.mxu0 0.0
    %267 = vmatpush1.msra.mxu0 0.0
    %268 = vmatprep.subr.mxu0 0.0
    %269 = vmatpush1.msra.mxu0 0.0
    %270 = vmatprep.subr.mxu0 0.0
    %271 = vmatpush1.msra.mxu0 0.0
    %272 = vmatprep.subr.mxu0 0.0
    %273 = vmatpush1.msra.mxu0 0.0
    %274 = vmatprep.subr.mxu0 0.0
    %275 = vmatpush1.msra.mxu0 0.0
    %276 = vmatprep.subr.mxu0 0.0
    %277 = vmatpush1.msra.mxu0 0.0
    %278 = vmatprep.subr.mxu0 0.0
    %279 = vmatpush1.msra.mxu0 0.0
    %280 = vmatprep.subr.mxu0 0.0
    %281 = vmatpush1.msra.mxu0 0.0
    %282 = vmatprep.subr.mxu0 0.0
    %283 = vmatpush1.msra.mxu0 0.0
    %284 = vmatprep.subr.mxu0 0.0
    %285 = vmatpush1.msra.mxu0 0.0
    %286 = vmatprep.subr.mxu0 0.0
    %287 = vmatpush1.msra.mxu0 0.0
    %288 = vmatprep.subr.mxu0 0.0
    %289 = vmatpush1.msra.mxu0 0.0
    %290 = vmatprep.subr.mxu0 0.0
    %291 = vmatpush1.msra.mxu0 0.0
    %292 = vmatprep.subr.mxu0 0.0
    %293 = vmatpush1.msra.mxu0 0.0
    %294 = vmatprep.subr.mxu0 0.0
    %295 = vmatpush1.msra.mxu0 0.0
    %296 = vmatprep.subr.mxu0 0.0
    %297 = vmatpush1.msra.mxu0 0.0
    %298 = vmatprep.subr.mxu0 0.0
    %299 = vmatpush1.msra.mxu0 0.0
    %300 = vmatprep.subr.mxu0 0.0
    %301 = vmatpush1.msra.mxu0 0.0
    %302 = vmatprep.subr.mxu0 0.0
    %303 = vmatpush1.msra.mxu0 0.0
    %304 = vmatprep.subr.mxu0 0.0
    %305 = vmatpush1.msra.mxu0 0.0
    %306 = vmatprep.subr.mxu0 0.0
    %307 = vmatpush1.msra.mxu0 0.0
    %308 = vmatprep.subr.mxu0 0.0
    %309 = vmatpush1.msra.mxu0 0.0
    %310 = vmatprep.subr.mxu0 0.0
    %311 = vmatpush1.msra.mxu0 0.0
    %312 = vmatprep.subr.mxu0 0.0
    %313 = vmatpush1.msra.mxu0 0.0
    %314 = vmatprep.subr.mxu0 0.0
    %315 = vmatpush1.msra.mxu0 0.0
    %316 = vmatprep.subr.mxu0 0.0
    %317 = vmatpush1.msra.mxu0 0.0
    %318 = vmatprep.mubr.f32.mxu0 0.0
    %319 = vmatmul.mubr.f32.gmra.mrb[0].mxu0 %v252
    %v320 = vpop.f32.mrb[0].mxu0
    %v321 = vadd.f32 %v248, %v320
    %v322 = vpop.f32.mrb[0].mxu0
    %323 = vdwg.mxu0
    %vm324 = vcmask 252928
    %v325 = vsel %vm324, %v321, -inf
    %326 = vmax.xlane.f32.xlu0 %v325
    %v327 = vpop.xlane.xlu0 %326
    %v328 = vsub.f32 %v321, %v327
    %v329 = vmul.f32 %v328, 1.442695
    %v330 = vpow.pop %v329
    %v331 = vsel %vm324, %v330, 0.0
    %332 = vadd.xlane.f32.xlu0 %v331
    %v333 = vpop.xlane.xlu0 %332
    %v334 = vrcp.pop %v333
    %v335 = vmul.f32 %v333, %v334
    %v336 = vsub.f32 2.0, %v335
    %v337 = vmul.f32 %v334, %v336
    %v338 = vmul.f32 %v330, %v337
    %339 = vst.msk [vmem:[#allocation2] sm:$0xff] %vm324, %v338
    %v340 = vmax.f32 %v321, 0.0
    %342 = vrot.lane.b32.xlu0 %v340, 97
    %v343 = vpop.permute.xlu0 %342
    %vm345 = vcmask 7168
    %346 = vst.msk [vmem:[%s7] sm:$0xff] %vm345, %v343
    // Predicated region
    $region26: #{flight_baggage_forward.1} parent=1 // pred_check
      _
    $region27: #{flight_baggage_forward.1} parent=1 // pred_check_branch
      %348 = sbr.rel (0) target = $region29
    $region28: #{flight_baggage_forward.1} parent=1 // pred_region
      %s350 = ssub.s32 128, 128
      %351 = vsyncadd [#allocation3], %s350
      %s353 = sshll.u32 [#allocation2], 4
      %s354 = int_to_ptr.vmem [resolvable:$true] %s353
      %356 = dma.vmem_to_hbm [thread:$0]  %s354, 128, %s6, [#allocation3]
    $region29: #{flight_baggage_forward.1} parent=1 // pred_fallthru
      _
    // Predicated region
    $region30: #{flight_baggage_forward.1} parent=1 // pred_check
      _
    $region31: #{flight_baggage_forward.1} parent=1 // pred_check_branch
      %358 = sbr.rel (0) target = $region33
    $region32: #{flight_baggage_forward.1} parent=1 // pred_region
      _
    $region33: #{flight_baggage_forward.1} parent=1 // pred_fallthru
      _
    // Predicated region
    $region34: #{flight_baggage_forward.1} parent=1 // pred_check
      _
    $region35: #{flight_baggage_forward.1} parent=1 // pred_check_branch
      %360 = sbr.rel (0) target = $region37
    $region36: #{flight_baggage_forward.1} parent=1 // pred_region
      %361 = dma.done [#allocation3], 128
    $region37: #{flight_baggage_forward.1} parent=1 // pred_fallthru
      _
    // Predicated region
    $region38: #{flight_baggage_forward.1} parent=1 // pred_check
      _
    $region39: #{flight_baggage_forward.1} parent=1 // pred_check_branch
      %363 = sbr.rel (0) target = $region41
    $region40: #{flight_baggage_forward.1} parent=1 // pred_region
      _
    $region41: #{flight_baggage_forward.1} parent=1 // pred_fallthru
      _
    %364 = vsyncpa [#allocation3], 1

</llo_original>
